<compile_context>
chip_gen: v5e
topology: v5e:2x2
jax: 0.10.0
libtpu: 0.0.40
codegen_flags: <defaults>
</compile_context>

<pallas_src>
import jax
import jax.numpy as jnp
from jax import lax
from jax.experimental import pallas as pl
from jax.experimental.pallas import tpu as pltpu


def _attention_pool_kernel(feats_ref, w1_ref, b1_ref, w2t_ref, b2_ref, out_ref):
    tb, bag, in_feat = feats_ref.shape
    head = w2t_ref.shape[0]

    x = feats_ref[...]                                    # (TB, bag, in_feat)
    x2d = x.reshape(tb * bag, in_feat)                    # one big row-tile for the MXU

    # Linear(in_feat -> hidden) + tanh for all TB*bag rows at once (single MXU matmul;
    # tanh issues to the EUP slot, overlapping the MXU drain).
    h = jnp.tanh(
        jnp.dot(x2d, w1_ref[...], preferred_element_type=jnp.float32) + b1_ref[...]
    )                                                     # (TB*bag, hidden)

    # Linear(hidden -> head). For head == 1 an MXU matmul would use a single output column,
    # so compute it as a lane reduction on the already-resident vregs instead.
    if head == 1:
        s = jnp.sum(h * w2t_ref[...], axis=-1, keepdims=True) + b2_ref[...]   # (TB*bag, 1)
    else:
        s = (
            lax.dot_general(
                h,
                w2t_ref[...],
                dimension_numbers=(((1,), (1,)), ((), ())),
                preferred_element_type=jnp.float32,
            )
            + b2_ref[...]
        )                                                 # (TB*bag, head)

    # Softmax over the bag dimension (per batch element, per head). Tiny data
    # (TB*bag*head scalars) -> layout cost here is negligible vs the matmul/pooling.
    s = s.reshape(tb, bag, head)
    m = jnp.max(s, axis=1, keepdims=True)
    e = jnp.exp(s - m)
    denom = jnp.sum(e, axis=1, keepdims=True)
    inv = pl.reciprocal(denom, approx=True)               # EUP slot
    inv = inv * (2.0 - denom * inv)                       # one Newton step -> ~f32 accuracy
    a = e * inv                                           # (TB, bag, head)

    # bmm(A.permute(0,2,1), feats): attention-weighted sum over the bag.
    if head == 1:
        pooled = jnp.sum(a * x, axis=1)                   # (TB, in_feat), pure VPU/XLU
    else:
        pooled = jnp.einsum(
            "tbh,tbd->thd", a, x, preferred_element_type=jnp.float32
        ).reshape(tb, head * in_feat)

    out_ref[...] = pooled.astype(out_ref.dtype)


def _round_up(x, m):
    return ((x + m - 1) // m) * m


def _choose_block_batch(batch, bag, in_feat, itemsize):
    # Keep one feats tile around <=4 MiB (double-buffered -> ~8 MiB) so the kernel fits the
    # default scoped-VMEM limit on v5e and leaves headroom on v7x (64 MiB physical VMEM).
    per_batch_row = max(bag * in_feat * itemsize, 1)
    tb = (4 * 1024 * 1024) // per_batch_row
    tb = max(8, min(512, (tb // 8) * 8))
    # Never tile past the (8-padded) batch.
    tb = min(tb, _round_up(batch, 8))
    # Prefer >= 2 grid steps when the batch allows it (megacore sharding on v7x).
    if batch >= 16:
        tb = min(tb, _round_up(-(-batch // 2), 8))
    return tb


def attention_pooling(feats, w1, b1, w2, b2, *, block_batch=None):
    """feats: [batch, bag, in_feat] -> [batch, head * in_feat] (== [batch, in_feat] for head=1)."""
    batch, bag, in_feat = feats.shape
    hidden = w1.shape[1]
    head = w2.shape[1]
    out_dim = head * in_feat

    tb = block_batch or _choose_block_batch(batch, bag, in_feat, feats.dtype.itemsize)
    padded_batch = _round_up(batch, tb)
    pad = padded_batch - batch
    feats_p = jnp.pad(feats, ((0, pad), (0, 0), (0, 0))) if pad else feats

    b1_2d = b1.reshape(1, hidden)
    b2_2d = b2.reshape(1, head)
    w2_t = w2.T                                           # (head, hidden): lane-dense rows

    n_blocks = padded_batch // tb

    flops = 2 * padded_batch * bag * (in_feat * hidden + hidden * head + in_feat * head)
    transcendentals = padded_batch * bag * (hidden + head)          # tanh + exp
    bytes_accessed = (
        feats_p.size + w1.size + b1.size + w2.size + b2.size + padded_batch * out_dim
    ) * feats.dtype.itemsize

    out = pl.pallas_call(
        _attention_pool_kernel,
        out_shape=jax.ShapeDtypeStruct((padded_batch, out_dim), feats.dtype),
        grid_spec=pltpu.PrefetchScalarGridSpec(
            num_scalar_prefetch=0,
            grid=(n_blocks,),
            in_specs=[
                pl.BlockSpec((tb, bag, in_feat), lambda b: (b, 0, 0)),   # feats (batch-blocked)
                pl.BlockSpec((in_feat, hidden), lambda b: (0, 0)),       # W1 (resident)
                pl.BlockSpec((1, hidden), lambda b: (0, 0)),             # b1 (resident)
                pl.BlockSpec((head, hidden), lambda b: (0, 0)),          # W2^T (resident)
                pl.BlockSpec((1, head), lambda b: (0, 0)),               # b2 (resident)
            ],
            out_specs=pl.BlockSpec((tb, out_dim), lambda b: (b, 0)),
        ),
        compiler_params=pltpu.CompilerParams(
            dimension_semantics=("parallel",),
            vmem_limit_bytes=32 * 1024 * 1024,
        ),
        cost_estimate=pl.CostEstimate(
            flops=int(flops),
            transcendentals=int(transcendentals),
            bytes_accessed=int(bytes_accessed),
        ),
    )(feats_p, w1, b1_2d, w2_t, b2_2d)

    return out[:batch] if pad else out


def attention_pooling_ref(feats, w1, b1, w2, b2):
    """Pure-JAX reference mirroring the PyTorch forward exactly."""
    batch, bag, in_feat = feats.shape
    head = w2.shape[1]
    flat = feats.reshape(batch * bag, in_feat)
    a = jnp.tanh(flat @ w1 + b1) @ w2 + b2
    a = jax.nn.softmax(a.reshape(batch, bag, head), axis=1)
    out = jnp.einsum("bnh,bnd->bhd", a, feats)
    return out.reshape(batch, head * in_feat)


def _make_params(key, in_feat, hidden, head):
    k_w1, k_b1, k_w2, k_b2 = jax.random.split(key, 4)
    w1 = jax.random.normal(k_w1, (in_feat, hidden), jnp.float32) * (1.0 / jnp.sqrt(in_feat))
    b1 = jax.random.normal(k_b1, (hidden,), jnp.float32) * 0.01
    w2 = jax.random.normal(k_w2, (hidden, head), jnp.float32) * (1.0 / jnp.sqrt(hidden))
    b2 = jax.random.normal(k_b2, (head,), jnp.float32) * 0.01
    return w1, b1, w2, b2


def _check(batch, bag, in_feat, hidden, head, key):
    k_feats, k_params = jax.random.split(key)
    feats = jax.random.normal(k_feats, (batch, bag, in_feat), dtype=jnp.float32)
    w1, b1, w2, b2 = _make_params(k_params, in_feat, hidden, head)
    out = jax.block_until_ready(attention_pooling(feats, w1, b1, w2, b2))
    ref = attention_pooling_ref(feats, w1, b1, w2, b2)
    assert out.shape == (batch, head * in_feat), out.shape
    err = float(jnp.max(jnp.abs(out - ref)))
    assert jnp.allclose(out, ref, atol=1e-4, rtol=1e-4), err


if __name__ == "__main__":
    key = jax.random.PRNGKey(0)
    k1, k2, k3 = jax.random.split(key, 3)

    # Case 1: module-default dims (in_feat=512, hidden=64, head=1), lane-dense output,
    # batch padded up to one TB=8 block.
    _check(batch=4, bag=16, in_feat=512, hidden=64, head=1, key=k1)

    # Case 2: batch not a multiple of 8 (exercises the padding + output slice path).
    _check(batch=3, bag=16, in_feat=128, hidden=32, head=1, key=k2)

    # Case 3: multiple grid steps + ragged final block (batch=20 -> TB=16, 2 blocks).
    _check(batch=20, bag=16, in_feat=128, hidden=32, head=1, key=k3)

    print("KERNEL_OK")
</pallas_src>

<mosaic_0001>
module attributes {stable_mosaic.version = 11 : i64} {
  func.func @_attention_pool_kernel(%arg0: i32, %arg1: memref<8x16x512xf32, #tpu.memory_space<vmem>>, %arg2: memref<512x64xf32, #tpu.memory_space<vmem>>, %arg3: memref<1x64xf32, #tpu.memory_space<vmem>>, %arg4: memref<1x64xf32, #tpu.memory_space<vmem>>, %arg5: memref<1x1xf32, #tpu.memory_space<vmem>>, %arg6: memref<8x512xf32, #tpu.memory_space<vmem>>) attributes {dimension_semantics = [#tpu.dimension_semantics<parallel>], iteration_bounds = array<i64: 1>, scalar_prefetch = 0 : i64, scratch_operands = 0 : i64, tpu.core_type = #tpu.core_type<tc>, window_params = [{transform_indices = @transform_0, window_bounds = array<i64: 8, 16, 512>}, {pipeline_mode = #tpu.pipeline_mode<synchronous>, transform_indices = @transform_1, window_bounds = array<i64: 512, 64>}, {pipeline_mode = #tpu.pipeline_mode<synchronous>, transform_indices = @transform_2, window_bounds = array<i64: 1, 64>}, {pipeline_mode = #tpu.pipeline_mode<synchronous>, transform_indices = @transform_3, window_bounds = array<i64: 1, 64>}, {pipeline_mode = #tpu.pipeline_mode<synchronous>, transform_indices = @transform_4, window_bounds = array<i64: 1, 1>}, {transform_indices = @transform_5, window_bounds = array<i64: 8, 512>}]} {
    %c0 = arith.constant 0 : index
    %c0_0 = arith.constant 0 : index
    %c0_1 = arith.constant 0 : index
    %0 = vector.load %arg1[%c0, %c0_0, %c0_1] : memref<8x16x512xf32, #tpu.memory_space<vmem>>, vector<8x16x512xf32>
    %1 = vector.shape_cast %0 : vector<8x16x512xf32> to vector<128x512xf32>
    %c0_2 = arith.constant 0 : index
    %c0_3 = arith.constant 0 : index
    %2 = vector.load %arg2[%c0_2, %c0_3] : memref<512x64xf32, #tpu.memory_space<vmem>>, vector<512x64xf32>
    %cst = arith.constant dense<0.000000e+00> : vector<128x64xf32>
    %3 = tpu.matmul %1, %2, %cst {dimension_numbers = #tpu.dot_dimension_numbers<[1], [0], [0], [1], [0, 0, 1, 1], [], []>} : vector<128x512xf32>, vector<512x64xf32>, vector<128x64xf32> -> vector<128x64xf32>
    %c0_4 = arith.constant 0 : index
    %c0_5 = arith.constant 0 : index
    %4 = vector.load %arg3[%c0_4, %c0_5] : memref<1x64xf32, #tpu.memory_space<vmem>>, vector<1x64xf32>
    %5 = vector.broadcast %4 : vector<1x64xf32> to vector<128x64xf32>
    %6 = arith.addf %3, %5 : vector<128x64xf32>
    %7 = math.tanh %6 : vector<128x64xf32>
    %c0_6 = arith.constant 0 : index
    %c0_7 = arith.constant 0 : index
    %8 = vector.load %arg4[%c0_6, %c0_7] : memref<1x64xf32, #tpu.memory_space<vmem>>, vector<1x64xf32>
    %9 = vector.broadcast %8 : vector<1x64xf32> to vector<128x64xf32>
    %10 = arith.mulf %7, %9 : vector<128x64xf32>
    %cst_8 = arith.constant dense<0.000000e+00> : vector<128xf32>
    %11 = vector.multi_reduction <add>, %10, %cst_8 [1] : vector<128x64xf32> to vector<128xf32>
    %12 = vector.shape_cast %11 : vector<128xf32> to vector<128x1xf32>
    %c0_9 = arith.constant 0 : index
    %c0_10 = arith.constant 0 : index
    %13 = vector.load %arg5[%c0_9, %c0_10] : memref<1x1xf32, #tpu.memory_space<vmem>>, vector<1x1xf32>
    %14 = vector.broadcast %13 : vector<1x1xf32> to vector<128x1xf32>
    %15 = arith.addf %12, %14 : vector<128x1xf32>
    %16 = vector.shape_cast %15 : vector<128x1xf32> to vector<8x16x1xf32>
    %cst_11 = arith.constant dense<0xFF800000> : vector<8x1xf32>
    %17 = vector.multi_reduction <maximumf>, %16, %cst_11 [1] : vector<8x16x1xf32> to vector<8x1xf32>
    %18 = vector.shape_cast %17 : vector<8x1xf32> to vector<8x1x1xf32>
    %19 = vector.broadcast %18 : vector<8x1x1xf32> to vector<8x16x1xf32>
    %20 = arith.subf %16, %19 : vector<8x16x1xf32>
    %21 = math.exp %20 : vector<8x16x1xf32>
    %cst_12 = arith.constant dense<0.000000e+00> : vector<8x1xf32>
    %22 = vector.multi_reduction <add>, %21, %cst_12 [1] : vector<8x16x1xf32> to vector<8x1xf32>
    %23 = vector.shape_cast %22 : vector<8x1xf32> to vector<8x1x1xf32>
    %24 = tpu.reciprocal %23 {approx = true} : vector<8x1x1xf32> -> vector<8x1x1xf32>
    %25 = arith.mulf %23, %24 : vector<8x1x1xf32>
    %cst_13 = arith.constant 2.000000e+00 : f32
    %26 = vector.broadcast %cst_13 : f32 to vector<8x1x1xf32>
    %27 = arith.subf %26, %25 : vector<8x1x1xf32>
    %28 = arith.mulf %24, %27 : vector<8x1x1xf32>
    %29 = vector.broadcast %28 : vector<8x1x1xf32> to vector<8x16x1xf32>
    %30 = arith.mulf %21, %29 : vector<8x16x1xf32>
    %31 = vector.broadcast %30 : vector<8x16x1xf32> to vector<8x16x512xf32>
    %32 = arith.mulf %31, %0 : vector<8x16x512xf32>
    %cst_14 = arith.constant dense<0.000000e+00> : vector<8x512xf32>
    %33 = vector.multi_reduction <add>, %32, %cst_14 [1] : vector<8x16x512xf32> to vector<8x512xf32>
    %c0_15 = arith.constant 0 : index
    %c0_16 = arith.constant 0 : index
    %34 = vector.load %arg6[%c0_15, %c0_16] : memref<8x512xf32, #tpu.memory_space<vmem>>, vector<8x512xf32>
    tpu.vector_store %arg6[%c0_15, %c0_16], %33 {strides = array<i32>} : memref<8x512xf32, #tpu.memory_space<vmem>>, vector<8x512xf32>,
    return
  }
  func.func @transform_0(%arg0: i32) -> (i32, i32, i32) {
    %c0_i32 = arith.constant 0 : i32
    %c0_i32_0 = arith.constant 0 : i32
    %c0_i32_1 = arith.constant 0 : i32
    return %arg0, %c0_i32, %c0_i32_0 : i32, i32, i32
  }
  func.func @transform_1(%arg0: i32) -> (i32, i32) {
    %c0_i32 = arith.constant 0 : i32
    %c0_i32_0 = arith.constant 0 : i32
    %c0_i32_1 = arith.constant 0 : i32
    return %c0_i32, %c0_i32_0 : i32, i32
  }
  func.func @transform_2(%arg0: i32) -> (i32, i32) {
    %c0_i32 = arith.constant 0 : i32
    %c0_i32_0 = arith.constant 0 : i32
    %c0_i32_1 = arith.constant 0 : i32
    return %c0_i32, %c0_i32_0 : i32, i32
  }
  func.func @transform_3(%arg0: i32) -> (i32, i32) {
    %c0_i32 = arith.constant 0 : i32
    %c0_i32_0 = arith.constant 0 : i32
    %c0_i32_1 = arith.constant 0 : i32
    return %c0_i32, %c0_i32_0 : i32, i32
  }
  func.func @transform_4(%arg0: i32) -> (i32, i32) {
    %c0_i32 = arith.constant 0 : i32
    %c0_i32_0 = arith.constant 0 : i32
    %c0_i32_1 = arith.constant 0 : i32
    return %c0_i32, %c0_i32_0 : i32, i32
  }
  func.func @transform_5(%arg0: i32) -> (i32, i32) {
    %c0_i32 = arith.constant 0 : i32
    %c0_i32_0 = arith.constant 0 : i32
    return %arg0, %c0_i32 : i32, i32
  }
}

</mosaic_0001>

<llo_original>
// kernel: tpu_custom_call.1
$region0: #{tpu_custom_call.1}
  #allocation0 [shape = 'u32[]', space=smem, size = 0x4, offset = 0x4, fixed_abs, tag = 'smem constant byte address 0x4 - core index']
  #allocation1 [shape = 'u32[72,128]{1,0:T(1,128)}', space=vmem, size = 0x9000, scoped, tag = 'internal scratch']
  #allocation2 [shape = 'f32[1,1]{1,0:T(1,128)S(1)}', space=vmem, size = 0x200, scoped, tag = 'scoped memory for tpu_custom_call.1']
  %s0 = inlined_call_operand.vmem [shape: f32[8,16,512], index: 0, kind: input, shape index: {}]
  %s1 = inlined_call_operand.vmem [shape: f32[512,64], index: 1, kind: input, shape index: {}]
  %s2 = inlined_call_operand.vmem [shape: f32[1,64], index: 2, kind: input, shape index: {}]
  %s3 = inlined_call_operand.vmem [shape: f32[1,64], index: 3, kind: input, shape index: {}]
  %s4 = inlined_call_operand.<no memory space> [shape: f32[1,1], index: 4, kind: input, shape index: {}]
  %s5 = inlined_call_operand.hbm [shape: f32[8,512], index: 5, kind: output, shape index: {}]
  %s6 = sld [smem:[#allocation0]]
  $region30: #{tpu_custom_call.1} parent=0
    _
  %s8 = ssub.s32 1, %s6
  %s9 = scalar_select 0, %s8, %s6
  %v10 = vstv %s4
  %11 = vst [vmem:[#allocation2] sm:$0x1] %v10
  $region1: #{tpu_custom_call.1} parent=0
    #allocation3 [shape = 'u8[16384]{0}', space=vmem, size = 0x4000, scoped, tag = 'output window, operand 0, single buffered']
    #allocation4 [shape = 's32[1]{0}', space=sflag, size = 0x4, scoped, tag = 'scoped memory for tpu_custom_call.1']
    %12 = vsyncpa [#allocation4], 0
    // Predicated region
    $region2: #{tpu_custom_call.1} parent=1 // pred_check
      _
    $region3: #{tpu_custom_call.1} parent=1 // pred_check_branch
      %14 = sbr.rel (0) target = $region5
    $region4: #{tpu_custom_call.1} parent=1 // pred_region
      _
    $region5: #{tpu_custom_call.1} parent=1 // pred_fallthru
      _
    // Predicated region
    $region6: #{tpu_custom_call.1} parent=1 // pred_check
      _
    $region7: #{tpu_custom_call.1} parent=1 // pred_check_branch
      %16 = sbr.rel (0) target = $region9
    $region8: #{tpu_custom_call.1} parent=1 // pred_region
      _
    $region9: #{tpu_custom_call.1} parent=1 // pred_fallthru
      _
    // Predicated region
    $region10: #{tpu_custom_call.1} parent=1 // pred_check
      _
    $region11: #{tpu_custom_call.1} parent=1 // pred_check_branch
      %18 = sbr.rel (0) target = $region13
    $region12: #{tpu_custom_call.1} parent=1 // pred_region
      _
    $region13: #{tpu_custom_call.1} parent=1 // pred_fallthru
      _
    // Predicated region
    $region14: #{tpu_custom_call.1} parent=1 // pred_check
      _
    $region15: #{tpu_custom_call.1} parent=1 // pred_check_branch
      %20 = sbr.rel (0) target = $region17
    $region16: #{tpu_custom_call.1} parent=1 // pred_region
      _
    $region17: #{tpu_custom_call.1} parent=1 // pred_fallthru
      _
    // Predicated region
    $region18: #{tpu_custom_call.1} parent=1 // pred_check
      _
    $region19: #{tpu_custom_call.1} parent=1 // pred_check_branch
      %22 = sbr.rel (0) target = $region21
    $region20: #{tpu_custom_call.1} parent=1 // pred_region
      _
    $region21: #{tpu_custom_call.1} parent=1 // pred_fallthru
      _
    %v23 = vld [vmem:[%s0] sm:$0xff]
    %v24 = vld [vmem:[%s0 + $0x8] sm:$0xff]
    %v25 = vld [vmem:[%s0 + $0x10] sm:$0xff]
    %v26 = vld [vmem:[%s0 + $0x18] sm:$0xff]
    %v27 = vld [vmem:[%s0 + $0x20] sm:$0xff]
    %v28 = vld [vmem:[%s0 + $0x28] sm:$0xff]
    %v29 = vld [vmem:[%s0 + $0x30] sm:$0xff]
    %v30 = vld [vmem:[%s0 + $0x38] sm:$0xff]
    %v31 = vld [vmem:[%s0 + $0x40] sm:$0xff]
    %v32 = vld [vmem:[%s0 + $0x48] sm:$0xff]
    %v33 = vld [vmem:[%s0 + $0x50] sm:$0xff]
    %v34 = vld [vmem:[%s0 + $0x58] sm:$0xff]
    %v35 = vld [vmem:[%s0 + $0x60] sm:$0xff]
    %v36 = vld [vmem:[%s0 + $0x68] sm:$0xff]
    %v37 = vld [vmem:[%s0 + $0x70] sm:$0xff]
    %v38 = vld [vmem:[%s0 + $0x78] sm:$0xff]
    %v39 = vld [vmem:[%s0 + $0x80] sm:$0xff]
    %v40 = vld [vmem:[%s0 + $0x88] sm:$0xff]
    %v41 = vld [vmem:[%s0 + $0x90] sm:$0xff]
    %v42 = vld [vmem:[%s0 + $0x98] sm:$0xff]
    %v43 = vld [vmem:[%s0 + $0xa0] sm:$0xff]
    %v44 = vld [vmem:[%s0 + $0xa8] sm:$0xff]
    %v45 = vld [vmem:[%s0 + $0xb0] sm:$0xff]
    %v46 = vld [vmem:[%s0 + $0xb8] sm:$0xff]
    %v47 = vld [vmem:[%s0 + $0xc0] sm:$0xff]
    %v48 = vld [vmem:[%s0 + $0xc8] sm:$0xff]
    %v49 = vld [vmem:[%s0 + $0xd0] sm:$0xff]
    %v50 = vld [vmem:[%s0 + $0xd8] sm:$0xff]
    %v51 = vld [vmem:[%s0 + $0xe0] sm:$0xff]
    %v52 = vld [vmem:[%s0 + $0xe8] sm:$0xff]
    %v53 = vld [vmem:[%s0 + $0xf0] sm:$0xff]
    %v54 = vld [vmem:[%s0 + $0xf8] sm:$0xff]
    %v55 = vld [vmem:[%s0 + $0x100] sm:$0xff]
    %v56 = vld [vmem:[%s0 + $0x108] sm:$0xff]
    %v57 = vld [vmem:[%s0 + $0x110] sm:$0xff]
    %v58 = vld [vmem:[%s0 + $0x118] sm:$0xff]
    %v59 = vld [vmem:[%s0 + $0x120] sm:$0xff]
    %v60 = vld [vmem:[%s0 + $0x128] sm:$0xff]
    %v61 = vld [vmem:[%s0 + $0x130] sm:$0xff]
    %v62 = vld [vmem:[%s0 + $0x138] sm:$0xff]
    %v63 = vld [vmem:[%s0 + $0x140] sm:$0xff]
    %v64 = vld [vmem:[%s0 + $0x148] sm:$0xff]
    %v65 = vld [vmem:[%s0 + $0x150] sm:$0xff]
    %v66 = vld [vmem:[%s0 + $0x158] sm:$0xff]
    %v67 = vld [vmem:[%s0 + $0x160] sm:$0xff]
    %v68 = vld [vmem:[%s0 + $0x168] sm:$0xff]
    %v69 = vld [vmem:[%s0 + $0x170] sm:$0xff]
    %v70 = vld [vmem:[%s0 + $0x178] sm:$0xff]
    %v71 = vld [vmem:[%s0 + $0x180] sm:$0xff]
    %v72 = vld [vmem:[%s0 + $0x188] sm:$0xff]
    %v73 = vld [vmem:[%s0 + $0x190] sm:$0xff]
    %v74 = vld [vmem:[%s0 + $0x198] sm:$0xff]
    %v75 = vld [vmem:[%s0 + $0x1a0] sm:$0xff]
    %v76 = vld [vmem:[%s0 + $0x1a8] sm:$0xff]
    %v77 = vld [vmem:[%s0 + $0x1b0] sm:$0xff]
    %v78 = vld [vmem:[%s0 + $0x1b8] sm:$0xff]
    %v79 = vld [vmem:[%s0 + $0x1c0] sm:$0xff]
    %v80 = vld [vmem:[%s0 + $0x1c8] sm:$0xff]
    %v81 = vld [vmem:[%s0 + $0x1d0] sm:$0xff]
    %v82 = vld [vmem:[%s0 + $0x1d8] sm:$0xff]
    %v83 = vld [vmem:[%s0 + $0x1e0] sm:$0xff]
    %v84 = vld [vmem:[%s0 + $0x1e8] sm:$0xff]
    %v85 = vld [vmem:[%s0 + $0x1f0] sm:$0xff]
    %v86 = vld [vmem:[%s0 + $0x1f8] sm:$0xff]
    %v87 = vld [vmem:[%s1] sm:$0xff]
    %v88 = vld [vmem:[%s1 + $0x8] sm:$0xff]
    %v89 = vld [vmem:[%s1 + $0x10] sm:$0xff]
    %v90 = vld [vmem:[%s1 + $0x18] sm:$0xff]
    %v91 = vld [vmem:[%s1 + $0x20] sm:$0xff]
    %v92 = vld [vmem:[%s1 + $0x28] sm:$0xff]
    %v93 = vld [vmem:[%s1 + $0x30] sm:$0xff]
    %v94 = vld [vmem:[%s1 + $0x38] sm:$0xff]
    %v95 = vld [vmem:[%s1 + $0x40] sm:$0xff]
    %v96 = vld [vmem:[%s1 + $0x48] sm:$0xff]
    %v97 = vld [vmem:[%s1 + $0x50] sm:$0xff]
    %v98 = vld [vmem:[%s1 + $0x58] sm:$0xff]
    %v99 = vld [vmem:[%s1 + $0x60] sm:$0xff]
    %v100 = vld [vmem:[%s1 + $0x68] sm:$0xff]
    %v101 = vld [vmem:[%s1 + $0x70] sm:$0xff]
    %v102 = vld [vmem:[%s1 + $0x78] sm:$0xff]
    %v103 = vld [vmem:[%s1 + $0x80] sm:$0xff]
    %v104 = vld [vmem:[%s1 + $0x88] sm:$0xff]
    %v105 = vld [vmem:[%s1 + $0x90] sm:$0xff]
    %v106 = vld [vmem:[%s1 + $0x98] sm:$0xff]
    %v107 = vld [vmem:[%s1 + $0xa0] sm:$0xff]
    %v108 = vld [vmem:[%s1 + $0xa8] sm:$0xff]
    %v109 = vld [vmem:[%s1 + $0xb0] sm:$0xff]
    %v110 = vld [vmem:[%s1 + $0xb8] sm:$0xff]
    %v111 = vld [vmem:[%s1 + $0xc0] sm:$0xff]
    %v112 = vld [vmem:[%s1 + $0xc8] sm:$0xff]
    %v113 = vld [vmem:[%s1 + $0xd0] sm:$0xff]
    %v114 = vld [vmem:[%s1 + $0xd8] sm:$0xff]
    %v115 = vld [vmem:[%s1 + $0xe0] sm:$0xff]
    %v116 = vld [vmem:[%s1 + $0xe8] sm:$0xff]
    %v117 = vld [vmem:[%s1 + $0xf0] sm:$0xff]
    %v118 = vld [vmem:[%s1 + $0xf8] sm:$0xff]
    %v119 = vld [vmem:[%s1 + $0x100] sm:$0xff]
    %v120 = vld [vmem:[%s1 + $0x108] sm:$0xff]
    %v121 = vld [vmem:[%s1 + $0x110] sm:$0xff]
    %v122 = vld [vmem:[%s1 + $0x118] sm:$0xff]
    %v123 = vld [vmem:[%s1 + $0x120] sm:$0xff]
    %v124 = vld [vmem:[%s1 + $0x128] sm:$0xff]
    %v125 = vld [vmem:[%s1 + $0x130] sm:$0xff]
    %v126 = vld [vmem:[%s1 + $0x138] sm:$0xff]
    %v127 = vld [vmem:[%s1 + $0x140] sm:$0xff]
    %v128 = vld [vmem:[%s1 + $0x148] sm:$0xff]
    %v129 = vld [vmem:[%s1 + $0x150] sm:$0xff]
    %v130 = vld [vmem:[%s1 + $0x158] sm:$0xff]
    %v131 = vld [vmem:[%s1 + $0x160] sm:$0xff]
    %v132 = vld [vmem:[%s1 + $0x168] sm:$0xff]
    %v133 = vld [vmem:[%s1 + $0x170] sm:$0xff]
    %v134 = vld [vmem:[%s1 + $0x178] sm:$0xff]
    %v135 = vld [vmem:[%s1 + $0x180] sm:$0xff]
    %v136 = vld [vmem:[%s1 + $0x188] sm:$0xff]
    %v137 = vld [vmem:[%s1 + $0x190] sm:$0xff]
    %v138 = vld [vmem:[%s1 + $0x198] sm:$0xff]
    %v139 = vld [vmem:[%s1 + $0x1a0] sm:$0xff]
    %v140 = vld [vmem:[%s1 + $0x1a8] sm:$0xff]
    %v141 = vld [vmem:[%s1 + $0x1b0] sm:$0xff]
    %v142 = vld [vmem:[%s1 + $0x1b8] sm:$0xff]
    %v143 = vld [vmem:[%s1 + $0x1c0] sm:$0xff]
    %v144 = vld [vmem:[%s1 + $0x1c8] sm:$0xff]
    %v145 = vld [vmem:[%s1 + $0x1d0] sm:$0xff]
    %v146 = vld [vmem:[%s1 + $0x1d8] sm:$0xff]
    %v147 = vld [vmem:[%s1 + $0x1e0] sm:$0xff]
    %v148 = vld [vmem:[%s1 + $0x1e8] sm:$0xff]
    %v149 = vld [vmem:[%s1 + $0x1f0] sm:$0xff]
    %v150 = vld [vmem:[%s1 + $0x1f8] sm:$0xff]
    %v151 = vld [vmem:[%s2] sm:$0x1]
    %v153 = vperm.slane %v151, 0
    %155 = vmatpush.msra.mxu0 %v102
    %156 = vmatpush.msra.mxu0 %v101
    %157 = vmatpush.msra.mxu0 %v100
    %158 = vmatpush.msra.mxu0 %v99
    %159 = vmatpush.msra.mxu0 %v98
    %160 = vmatpush.msra.mxu0 %v97
    %161 = vmatpush.msra.mxu0 %v96
    %162 = vmatpush.msra.mxu0 %v95
    %163 = vmatpush.msra.mxu0 %v94
    %164 = vmatpush.msra.mxu0 %v93
    %165 = vmatpush.msra.mxu0 %v92
    %166 = vmatpush.msra.mxu0 %v91
    %167 = vmatpush.msra.mxu0 %v90
    %168 = vmatpush.msra.mxu0 %v89
    %169 = vmatpush.msra.mxu0 %v88
    %170 = vmatpush.msra.mxu0 %v87
    %171 = vmatmul.f32.gmra.mxu0 %v23
    %v172 = vpop.f32.mrf.mxu0
    %v173 = vadd.f32 %v153, %v172
    %174 = vmatmul.f32.gmra.mxu0 %v27
    %v175 = vpop.f32.mrf.mxu0
    %v176 = vadd.f32 %v153, %v175
    %177 = vmatmul.f32.gmra.mxu0 %v31
    %v178 = vpop.f32.mrf.mxu0
    %v179 = vadd.f32 %v153, %v178
    %180 = vmatmul.f32.gmra.mxu0 %v35
    %v181 = vpop.f32.mrf.mxu0
    %v182 = vadd.f32 %v153, %v181
    %183 = vmatmul.f32.gmra.mxu0 %v39
    %v184 = vpop.f32.mrf.mxu0
    %v185 = vadd.f32 %v153, %v184
    %186 = vmatmul.f32.gmra.mxu0 %v43
    %v187 = vpop.f32.mrf.mxu0
    %v188 = vadd.f32 %v153, %v187
    %189 = vmatmul.f32.gmra.mxu0 %v47
    %v190 = vpop.f32.mrf.mxu0
    %v191 = vadd.f32 %v153, %v190
    %192 = vmatmul.f32.gmra.mxu0 %v51
    %v193 = vpop.f32.mrf.mxu0
    %v194 = vadd.f32 %v153, %v193
    %195 = vmatmul.f32.gmra.mxu0 %v55
    %v196 = vpop.f32.mrf.mxu0
    %v197 = vadd.f32 %v153, %v196
    %198 = vmatmul.f32.gmra.mxu0 %v59
    %v199 = vpop.f32.mrf.mxu0
    %v200 = vadd.f32 %v153, %v199
    %201 = vmatmul.f32.gmra.mxu0 %v63
    %v202 = vpop.f32.mrf.mxu0
    %v203 = vadd.f32 %v153, %v202
    %204 = vmatmul.f32.gmra.mxu0 %v67
    %v205 = vpop.f32.mrf.mxu0
    %v206 = vadd.f32 %v153, %v205
    %207 = vmatmul.f32.gmra.mxu0 %v71
    %v208 = vpop.f32.mrf.mxu0
    %v209 = vadd.f32 %v153, %v208
    %210 = vmatmul.f32.gmra.mxu0 %v75
    %v211 = vpop.f32.mrf.mxu0
    %v212 = vadd.f32 %v153, %v211
    %213 = vmatmul.f32.gmra.mxu0 %v79
    %v214 = vpop.f32.mrf.mxu0
    %v215 = vadd.f32 %v153, %v214
    %216 = vmatmul.f32.gmra.mxu0 %v83
    %v217 = vpop.f32.mrf.mxu0
    %v218 = vadd.f32 %v153, %v217
    %219 = vdwg.mxu0
    %220 = vmatpush.msra.mxu0 %v118
    %221 = vmatpush.msra.mxu0 %v117
    %222 = vmatpush.msra.mxu0 %v116
    %223 = vmatpush.msra.mxu0 %v115
    %224 = vmatpush.msra.mxu0 %v114
    %225 = vmatpush.msra.mxu0 %v113
    %226 = vmatpush.msra.mxu0 %v112
    %227 = vmatpush.msra.mxu0 %v111
    %228 = vmatpush.msra.mxu0 %v110
    %229 = vmatpush.msra.mxu0 %v109
    %230 = vmatpush.msra.mxu0 %v108
    %231 = vmatpush.msra.mxu0 %v107
    %232 = vmatpush.msra.mxu0 %v106
    %233 = vmatpush.msra.mxu0 %v105
    %234 = vmatpush.msra.mxu0 %v104
    %235 = vmatpush.msra.mxu0 %v103
    %236 = vmatmul.f32.gmra.mxu0 %v24
    %v237 = vpop.f32.mrf.mxu0
    %v238 = vadd.f32 %v173, %v237
    %239 = vmatmul.f32.gmra.mxu0 %v28
    %v240 = vpop.f32.mrf.mxu0
    %v241 = vadd.f32 %v176, %v240
    %242 = vmatmul.f32.gmra.mxu0 %v32
    %v243 = vpop.f32.mrf.mxu0
    %v244 = vadd.f32 %v179, %v243
    %245 = vmatmul.f32.gmra.mxu0 %v36
    %v246 = vpop.f32.mrf.mxu0
    %v247 = vadd.f32 %v182, %v246
    %248 = vmatmul.f32.gmra.mxu0 %v40
    %v249 = vpop.f32.mrf.mxu0
    %v250 = vadd.f32 %v185, %v249
    %251 = vmatmul.f32.gmra.mxu0 %v44
    %v252 = vpop.f32.mrf.mxu0
    %v253 = vadd.f32 %v188, %v252
    %254 = vmatmul.f32.gmra.mxu0 %v48
    %v255 = vpop.f32.mrf.mxu0
    %v256 = vadd.f32 %v191, %v255
    %257 = vmatmul.f32.gmra.mxu0 %v52
    %v258 = vpop.f32.mrf.mxu0
    %v259 = vadd.f32 %v194, %v258
    %260 = vmatmul.f32.gmra.mxu0 %v56
    %v261 = vpop.f32.mrf.mxu0
    %v262 = vadd.f32 %v197, %v261
    %263 = vmatmul.f32.gmra.mxu0 %v60
    %v264 = vpop.f32.mrf.mxu0
    %v265 = vadd.f32 %v200, %v264
    %266 = vmatmul.f32.gmra.mxu0 %v64
    %v267 = vpop.f32.mrf.mxu0
    %v268 = vadd.f32 %v203, %v267
    %269 = vmatmul.f32.gmra.mxu0 %v68
    %v270 = vpop.f32.mrf.mxu0
    %v271 = vadd.f32 %v206, %v270
    %272 = vmatmul.f32.gmra.mxu0 %v72
    %v273 = vpop.f32.mrf.mxu0
    %v274 = vadd.f32 %v209, %v273
    %275 = vmatmul.f32.gmra.mxu0 %v76
    %v276 = vpop.f32.mrf.mxu0
    %v277 = vadd.f32 %v212, %v276
    %278 = vmatmul.f32.gmra.mxu0 %v80
    %v279 = vpop.f32.mrf.mxu0
    %v280 = vadd.f32 %v215, %v279
    %281 = vmatmul.f32.gmra.mxu0 %v84
    %v282 = vpop.f32.mrf.mxu0
    %v283 = vadd.f32 %v218, %v282
    %284 = vdwg.mxu0
    %285 = vmatpush.msra.mxu0 %v134
    %286 = vmatpush.msra.mxu0 %v133
    %287 = vmatpush.msra.mxu0 %v132
    %288 = vmatpush.msra.mxu0 %v131
    %289 = vmatpush.msra.mxu0 %v130
    %290 = vmatpush.msra.mxu0 %v129
    %291 = vmatpush.msra.mxu0 %v128
    %292 = vmatpush.msra.mxu0 %v127
    %293 = vmatpush.msra.mxu0 %v126
    %294 = vmatpush.msra.mxu0 %v125
    %295 = vmatpush.msra.mxu0 %v124
    %296 = vmatpush.msra.mxu0 %v123
    %297 = vmatpush.msra.mxu0 %v122
    %298 = vmatpush.msra.mxu0 %v121
    %299 = vmatpush.msra.mxu0 %v120
    %300 = vmatpush.msra.mxu0 %v119
    %301 = vmatmul.f32.gmra.mxu0 %v25
    %v302 = vpop.f32.mrf.mxu0
    %v303 = vadd.f32 %v238, %v302
    %304 = vmatmul.f32.gmra.mxu0 %v29
    %v305 = vpop.f32.mrf.mxu0
    %v306 = vadd.f32 %v241, %v305
    %307 = vmatmul.f32.gmra.mxu0 %v33
    %v308 = vpop.f32.mrf.mxu0
    %v309 = vadd.f32 %v244, %v308
    %310 = vmatmul.f32.gmra.mxu0 %v37
    %v311 = vpop.f32.mrf.mxu0
    %v312 = vadd.f32 %v247, %v311
    %313 = vmatmul.f32.gmra.mxu0 %v41
    %v314 = vpop.f32.mrf.mxu0
    %v315 = vadd.f32 %v250, %v314
    %316 = vmatmul.f32.gmra.mxu0 %v45
    %v317 = vpop.f32.mrf.mxu0
    %v318 = vadd.f32 %v253, %v317
    %319 = vmatmul.f32.gmra.mxu0 %v49
    %v320 = vpop.f32.mrf.mxu0
    %v321 = vadd.f32 %v256, %v320
    %322 = vmatmul.f32.gmra.mxu0 %v53
    %v323 = vpop.f32.mrf.mxu0
    %v324 = vadd.f32 %v259, %v323
    %325 = vmatmul.f32.gmra.mxu0 %v57
    %v326 = vpop.f32.mrf.mxu0
    %v327 = vadd.f32 %v262, %v326
    %328 = vmatmul.f32.gmra.mxu0 %v61
    %v329 = vpop.f32.mrf.mxu0
    %v330 = vadd.f32 %v265, %v329
    %331 = vmatmul.f32.gmra.mxu0 %v65
    %v332 = vpop.f32.mrf.mxu0
    %v333 = vadd.f32 %v268, %v332
    %334 = vmatmul.f32.gmra.mxu0 %v69
    %v335 = vpop.f32.mrf.mxu0
    %v336 = vadd.f32 %v271, %v335
    %337 = vmatmul.f32.gmra.mxu0 %v73
    %v338 = vpop.f32.mrf.mxu0
    %v339 = vadd.f32 %v274, %v338
    %340 = vmatmul.f32.gmra.mxu0 %v77
    %v341 = vpop.f32.mrf.mxu0
    %v342 = vadd.f32 %v277, %v341
    %343 = vmatmul.f32.gmra.mxu0 %v81
    %v344 = vpop.f32.mrf.mxu0
    %v345 = vadd.f32 %v280, %v344
    %346 = vmatmul.f32.gmra.mxu0 %v85
    %v347 = vpop.f32.mrf.mxu0
    %v348 = vadd.f32 %v283, %v347
    %349 = vdwg.mxu0
    %350 = vmatpush.msra.mxu0 %v150
    %351 = vmatpush.msra.mxu0 %v149
    %352 = vmatpush.msra.mxu0 %v148
    %353 = vmatpush.msra.mxu0 %v147
    %354 = vmatpush.msra.mxu0 %v146
    %355 = vmatpush.msra.mxu0 %v145
    %356 = vmatpush.msra.mxu0 %v144
    %357 = vmatpush.msra.mxu0 %v143
    %358 = vmatpush.msra.mxu0 %v142
    %359 = vmatpush.msra.mxu0 %v141
    %360 = vmatpush.msra.mxu0 %v140
    %361 = vmatpush.msra.mxu0 %v139
    %362 = vmatpush.msra.mxu0 %v138
    %363 = vmatpush.msra.mxu0 %v137
    %364 = vmatpush.msra.mxu0 %v136
    %365 = vmatpush.msra.mxu0 %v135
    %366 = vmatmul.f32.gmra.mxu0 %v26
    %v367 = vpop.f32.mrf.mxu0
    %v368 = vadd.f32 %v303, %v367
    %369 = vmatmul.f32.gmra.mxu0 %v30
    %v370 = vpop.f32.mrf.mxu0
    %v371 = vadd.f32 %v306, %v370
    %372 = vmatmul.f32.gmra.mxu0 %v34
    %v373 = vpop.f32.mrf.mxu0
    %v374 = vadd.f32 %v309, %v373
    %375 = vmatmul.f32.gmra.mxu0 %v38
    %v376 = vpop.f32.mrf.mxu0
    %v377 = vadd.f32 %v312, %v376
    %378 = vmatmul.f32.gmra.mxu0 %v42
    %v379 = vpop.f32.mrf.mxu0
    %v380 = vadd.f32 %v315, %v379
    %381 = vmatmul.f32.gmra.mxu0 %v46
    %v382 = vpop.f32.mrf.mxu0
    %v383 = vadd.f32 %v318, %v382
    %384 = vmatmul.f32.gmra.mxu0 %v50
    %v385 = vpop.f32.mrf.mxu0
    %v386 = vadd.f32 %v321, %v385
    %387 = vmatmul.f32.gmra.mxu0 %v54
    %v388 = vpop.f32.mrf.mxu0
    %v389 = vadd.f32 %v324, %v388
    %390 = vmatmul.f32.gmra.mxu0 %v58
    %v391 = vpop.f32.mrf.mxu0
    %v392 = vadd.f32 %v327, %v391
    %393 = vmatmul.f32.gmra.mxu0 %v62
    %v394 = vpop.f32.mrf.mxu0
    %v395 = vadd.f32 %v330, %v394
    %396 = vmatmul.f32.gmra.mxu0 %v66
    %v397 = vpop.f32.mrf.mxu0
    %v398 = vadd.f32 %v333, %v397
    %399 = vmatmul.f32.gmra.mxu0 %v70
    %v400 = vpop.f32.mrf.mxu0
    %v401 = vadd.f32 %v336, %v400
    %402 = vmatmul.f32.gmra.mxu0 %v74
    %v403 = vpop.f32.mrf.mxu0
    %v404 = vadd.f32 %v339, %v403
    %405 = vmatmul.f32.gmra.mxu0 %v78
    %v406 = vpop.f32.mrf.mxu0
    %v407 = vadd.f32 %v342, %v406
    %408 = vmatmul.f32.gmra.mxu0 %v82
    %v409 = vpop.f32.mrf.mxu0
    %v410 = vadd.f32 %v345, %v409
    %411 = vmatmul.f32.gmra.mxu0 %v86
    %v412 = vpop.f32.mrf.mxu0
    %v413 = vadd.f32 %v348, %v412
    %414 = vdwg.mxu0
    %v415 = vtanh.pop %v368
    %v416 = vtanh.pop %v371
    %v417 = vtanh.pop %v374
    %v418 = vtanh.pop %v377
    %v419 = vtanh.pop %v380
    %v420 = vtanh.pop %v383
    %v421 = vtanh.pop %v386
    %v422 = vtanh.pop %v389
    %v423 = vtanh.pop %v392
    %v424 = vtanh.pop %v395
    %v425 = vtanh.pop %v398
    %v426 = vtanh.pop %v401
    %v427 = vtanh.pop %v404
    %v428 = vtanh.pop %v407
    %v429 = vtanh.pop %v410
    %v430 = vtanh.pop %v413
    %v431 = vld [vmem:[%s3] sm:$0x1]
    %v433 = vperm.slane %v431, 0
    %v435 = vmul.f32 %v415, %v433
    %v436 = vmul.f32 %v416, %v433
    %v437 = vmul.f32 %v417, %v433
    %v438 = vmul.f32 %v418, %v433
    %v439 = vmul.f32 %v419, %v433
    %v440 = vmul.f32 %v420, %v433
    %v441 = vmul.f32 %v421, %v433
    %v442 = vmul.f32 %v422, %v433
    %v443 = vmul.f32 %v423, %v433
    %v444 = vmul.f32 %v424, %v433
    %v445 = vmul.f32 %v425, %v433
    %v446 = vmul.f32 %v426, %v433
    %v447 = vmul.f32 %v427, %v433
    %v448 = vmul.f32 %v428, %v433
    %v449 = vmul.f32 %v429, %v433
    %v450 = vmul.f32 %v430, %v433
    %vm451 = vcmask 523264
    %v452 = vsel %vm451, %v435, 0.0
    %453 = vadd.xlane.f32.xlu0 %v452
    %v454 = vpop.xlane.xlu0 %453
    %v455 = vsel %vm451, %v436, 0.0
    %456 = vadd.xlane.f32.xlu0 %v455
    %v457 = vpop.xlane.xlu0 %456
    %v458 = vsel %vm451, %v437, 0.0
    %459 = vadd.xlane.f32.xlu0 %v458
    %v460 = vpop.xlane.xlu0 %459
    %v461 = vsel %vm451, %v438, 0.0
    %462 = vadd.xlane.f32.xlu0 %v461
    %v463 = vpop.xlane.xlu0 %462
    %v464 = vsel %vm451, %v439, 0.0
    %465 = vadd.xlane.f32.xlu0 %v464
    %v466 = vpop.xlane.xlu0 %465
    %v467 = vsel %vm451, %v440, 0.0
    %468 = vadd.xlane.f32.xlu0 %v467
    %v469 = vpop.xlane.xlu0 %468
    %v470 = vsel %vm451, %v441, 0.0
    %471 = vadd.xlane.f32.xlu0 %v470
    %v472 = vpop.xlane.xlu0 %471
    %v473 = vsel %vm451, %v442, 0.0
    %474 = vadd.xlane.f32.xlu0 %v473
    %v475 = vpop.xlane.xlu0 %474
    %v476 = vsel %vm451, %v443, 0.0
    %477 = vadd.xlane.f32.xlu0 %v476
    %v478 = vpop.xlane.xlu0 %477
    %v479 = vsel %vm451, %v444, 0.0
    %480 = vadd.xlane.f32.xlu0 %v479
    %v481 = vpop.xlane.xlu0 %480
    %v482 = vsel %vm451, %v445, 0.0
    %483 = vadd.xlane.f32.xlu0 %v482
    %v484 = vpop.xlane.xlu0 %483
    %v485 = vsel %vm451, %v446, 0.0
    %486 = vadd.xlane.f32.xlu0 %v485
    %v487 = vpop.xlane.xlu0 %486
    %v488 = vsel %vm451, %v447, 0.0
    %489 = vadd.xlane.f32.xlu0 %v488
    %v490 = vpop.xlane.xlu0 %489
    %v491 = vsel %vm451, %v448, 0.0
    %492 = vadd.xlane.f32.xlu0 %v491
    %v493 = vpop.xlane.xlu0 %492
    %v494 = vsel %vm451, %v449, 0.0
    %495 = vadd.xlane.f32.xlu0 %v494
    %v496 = vpop.xlane.xlu0 %495
    %v497 = vsel %vm451, %v450, 0.0
    %498 = vadd.xlane.f32.xlu0 %v497
    %v499 = vpop.xlane.xlu0 %498
    %v500 = vld [vmem:[#allocation2] sm:$0x1]
    %v502 = vperm.slane %v500, 0
    %v504 = vadd.f32 %v454, %v502
    %v505 = vadd.f32 %v457, %v502
    %v506 = vadd.f32 %v460, %v502
    %v507 = vadd.f32 %v463, %v502
    %v508 = vadd.f32 %v466, %v502
    %v509 = vadd.f32 %v469, %v502
    %v510 = vadd.f32 %v472, %v502
    %v511 = vadd.f32 %v475, %v502
    %v512 = vadd.f32 %v478, %v502
    %v513 = vadd.f32 %v481, %v502
    %v514 = vadd.f32 %v484, %v502
    %v515 = vadd.f32 %v487, %v502
    %v516 = vadd.f32 %v490, %v502
    %v517 = vadd.f32 %v493, %v502
    %v518 = vadd.f32 %v496, %v502
    %v519 = vadd.f32 %v499, %v502
    %vm520 = vcmask 7168
    %v521 = vsel %vm520, %v504, -inf
    %v522 = vsel %vm520, %v505, -inf
    %v523 = vmax.f32 %v521, %v522
    %v524 = vrot.slane %v523, 4
    %v525 = vmax.f32 %v523, %v524
    %v526 = vrot.slane %v525, 2
    %v527 = vmax.f32 %v525, %v526
    %v528 = vrot.slane %v527, 1
    %v529 = vmax.f32 %v527, %v528
    %v530 = vsel %vm520, %v506, -inf
    %v531 = vsel %vm520, %v507, -inf
    %v532 = vmax.f32 %v530, %v531
    %v533 = vrot.slane %v532, 4
    %v534 = vmax.f32 %v532, %v533
    %v535 = vrot.slane %v534, 2
    %v536 = vmax.f32 %v534, %v535
    %v537 = vrot.slane %v536, 1
    %v538 = vmax.f32 %v536, %v537
    %v539 = vsel %vm520, %v508, -inf
    %v540 = vsel %vm520, %v509, -inf
    %v541 = vmax.f32 %v539, %v540
    %v542 = vrot.slane %v541, 4
    %v543 = vmax.f32 %v541, %v542
    %v544 = vrot.slane %v543, 2
    %v545 = vmax.f32 %v543, %v544
    %v546 = vrot.slane %v545, 1
    %v547 = vmax.f32 %v545, %v546
    %v548 = vsel %vm520, %v510, -inf
    %v549 = vsel %vm520, %v511, -inf
    %v550 = vmax.f32 %v548, %v549
    %v551 = vrot.slane %v550, 4
    %v552 = vmax.f32 %v550, %v551
    %v553 = vrot.slane %v552, 2
    %v554 = vmax.f32 %v552, %v553
    %v555 = vrot.slane %v554, 1
    %v556 = vmax.f32 %v554, %v555
    %v557 = vsel %vm520, %v512, -inf
    %v558 = vsel %vm520, %v513, -inf
    %v559 = vmax.f32 %v557, %v558
    %v560 = vrot.slane %v559, 4
    %v561 = vmax.f32 %v559, %v560
    %v562 = vrot.slane %v561, 2
    %v563 = vmax.f32 %v561, %v562
    %v564 = vrot.slane %v563, 1
    %v565 = vmax.f32 %v563, %v564
    %v566 = vsel %vm520, %v514, -inf
    %v567 = vsel %vm520, %v515, -inf
    %v568 = vmax.f32 %v566, %v567
    %v569 = vrot.slane %v568, 4
    %v570 = vmax.f32 %v568, %v569
    %v571 = vrot.slane %v570, 2
    %v572 = vmax.f32 %v570, %v571
    %v573 = vrot.slane %v572, 1
    %v574 = vmax.f32 %v572, %v573
    %v575 = vsel %vm520, %v516, -inf
    %v576 = vsel %vm520, %v517, -inf
    %v577 = vmax.f32 %v575, %v576
    %v578 = vrot.slane %v577, 4
    %v579 = vmax.f32 %v577, %v578
    %v580 = vrot.slane %v579, 2
    %v581 = vmax.f32 %v579, %v580
    %v582 = vrot.slane %v581, 1
    %v583 = vmax.f32 %v581, %v582
    %v584 = vsel %vm520, %v518, -inf
    %v585 = vsel %vm520, %v519, -inf
    %v586 = vmax.f32 %v584, %v585
    %v587 = vrot.slane %v586, 4
    %v588 = vmax.f32 %v586, %v587
    %v589 = vrot.slane %v588, 2
    %v590 = vmax.f32 %v588, %v589
    %v591 = vrot.slane %v590, 1
    %v592 = vmax.f32 %v590, %v591
    %v593 = vsub.f32 %v504, %v529
    %v594 = vsub.f32 %v505, %v529
    %v595 = vsub.f32 %v506, %v538
    %v596 = vsub.f32 %v507, %v538
    %v597 = vsub.f32 %v508, %v547
    %v598 = vsub.f32 %v509, %v547
    %v599 = vsub.f32 %v510, %v556
    %v600 = vsub.f32 %v511, %v556
    %v601 = vsub.f32 %v512, %v565
    %v602 = vsub.f32 %v513, %v565
    %v603 = vsub.f32 %v514, %v574
    %v604 = vsub.f32 %v515, %v574
    %v605 = vsub.f32 %v516, %v583
    %v606 = vsub.f32 %v517, %v583
    %v607 = vsub.f32 %v518, %v592
    %v608 = vsub.f32 %v519, %v592
    %v609 = vmul.f32 %v593, 1.442695
    %v610 = vpow.pop %v609
    %v611 = vmul.f32 %v594, 1.442695
    %v612 = vpow.pop %v611
    %v613 = vmul.f32 %v595, 1.442695
    %v614 = vpow.pop %v613
    %v615 = vmul.f32 %v596, 1.442695
    %v616 = vpow.pop %v615
    %v617 = vmul.f32 %v597, 1.442695
    %v618 = vpow.pop %v617
    %v619 = vmul.f32 %v598, 1.442695
    %v620 = vpow.pop %v619
    %v621 = vmul.f32 %v599, 1.442695
    %v622 = vpow.pop %v621
    %v623 = vmul.f32 %v600, 1.442695
    %v624 = vpow.pop %v623
    %v625 = vmul.f32 %v601, 1.442695
    %v626 = vpow.pop %v625
    %v627 = vmul.f32 %v602, 1.442695
    %v628 = vpow.pop %v627
    %v629 = vmul.f32 %v603, 1.442695
    %v630 = vpow.pop %v629
    %v631 = vmul.f32 %v604, 1.442695
    %v632 = vpow.pop %v631
    %v633 = vmul.f32 %v605, 1.442695
    %v634 = vpow.pop %v633
    %v635 = vmul.f32 %v606, 1.442695
    %v636 = vpow.pop %v635
    %v637 = vmul.f32 %v607, 1.442695
    %v638 = vpow.pop %v637
    %v639 = vmul.f32 %v608, 1.442695
    %v640 = vpow.pop %v639
    %v641 = vsel %vm520, %v610, 0.0
    %v642 = vsel %vm520, %v612, 0.0
    %v643 = vadd.f32 %v641, %v642
    %v644 = vrot.slane %v643, 4
    %v645 = vadd.f32 %v643, %v644
    %v646 = vrot.slane %v645, 2
    %v647 = vadd.f32 %v645, %v646
    %v648 = vrot.slane %v647, 1
    %v649 = vadd.f32 %v647, %v648
    %v650 = vsel %vm520, %v614, 0.0
    %v651 = vsel %vm520, %v616, 0.0
    %v652 = vadd.f32 %v650, %v651
    %v653 = vrot.slane %v652, 4
    %v654 = vadd.f32 %v652, %v653
    %v655 = vrot.slane %v654, 2
    %v656 = vadd.f32 %v654, %v655
    %v657 = vrot.slane %v656, 1
    %v658 = vadd.f32 %v656, %v657
    %v659 = vsel %vm520, %v618, 0.0
    %v660 = vsel %vm520, %v620, 0.0
    %v661 = vadd.f32 %v659, %v660
    %v662 = vrot.slane %v661, 4
    %v663 = vadd.f32 %v661, %v662
    %v664 = vrot.slane %v663, 2
    %v665 = vadd.f32 %v663, %v664
    %v666 = vrot.slane %v665, 1
    %v667 = vadd.f32 %v665, %v666
    %v668 = vsel %vm520, %v622, 0.0
    %v669 = vsel %vm520, %v624, 0.0
    %v670 = vadd.f32 %v668, %v669
    %v671 = vrot.slane %v670, 4
    %v672 = vadd.f32 %v670, %v671
    %v673 = vrot.slane %v672, 2
    %v674 = vadd.f32 %v672, %v673
    %v675 = vrot.slane %v674, 1
    %v676 = vadd.f32 %v674, %v675
    %v677 = vsel %vm520, %v626, 0.0
    %v678 = vsel %vm520, %v628, 0.0
    %v679 = vadd.f32 %v677, %v678
    %v680 = vrot.slane %v679, 4
    %v681 = vadd.f32 %v679, %v680
    %v682 = vrot.slane %v681, 2
    %v683 = vadd.f32 %v681, %v682
    %v684 = vrot.slane %v683, 1
    %v685 = vadd.f32 %v683, %v684
    %v686 = vsel %vm520, %v630, 0.0
    %v687 = vsel %vm520, %v632, 0.0
    %v688 = vadd.f32 %v686, %v687
    %v689 = vrot.slane %v688, 4
    %v690 = vadd.f32 %v688, %v689
    %v691 = vrot.slane %v690, 2
    %v692 = vadd.f32 %v690, %v691
    %v693 = vrot.slane %v692, 1
    %v694 = vadd.f32 %v692, %v693
    %v695 = vsel %vm520, %v634, 0.0
    %v696 = vsel %vm520, %v636, 0.0
    %v697 = vadd.f32 %v695, %v696
    %v698 = vrot.slane %v697, 4
    %v699 = vadd.f32 %v697, %v698
    %v700 = vrot.slane %v699, 2
    %v701 = vadd.f32 %v699, %v700
    %v702 = vrot.slane %v701, 1
    %v703 = vadd.f32 %v701, %v702
    %v704 = vsel %vm520, %v638, 0.0
    %v705 = vsel %vm520, %v640, 0.0
    %v706 = vadd.f32 %v704, %v705
    %v707 = vrot.slane %v706, 4
    %v708 = vadd.f32 %v706, %v707
    %v709 = vrot.slane %v708, 2
    %v710 = vadd.f32 %v708, %v709
    %v711 = vrot.slane %v710, 1
    %v712 = vadd.f32 %v710, %v711
    %v713 = vrcp.pop %v649
    %v714 = vrcp.pop %v658
    %v715 = vrcp.pop %v667
    %v716 = vrcp.pop %v676
    %v717 = vrcp.pop %v685
    %v718 = vrcp.pop %v694
    %v719 = vrcp.pop %v703
    %v720 = vrcp.pop %v712
    %v721 = vmul.f32 %v649, %v713
    %v722 = vmul.f32 %v658, %v714
    %v723 = vmul.f32 %v667, %v715
    %v724 = vmul.f32 %v676, %v716
    %v725 = vmul.f32 %v685, %v717
    %v726 = vmul.f32 %v694, %v718
    %v727 = vmul.f32 %v703, %v719
    %v728 = vmul.f32 %v712, %v720
    %v729 = vsub.f32 2.0, %v721
    %v730 = vsub.f32 2.0, %v722
    %v731 = vsub.f32 2.0, %v723
    %v732 = vsub.f32 2.0, %v724
    %v733 = vsub.f32 2.0, %v725
    %v734 = vsub.f32 2.0, %v726
    %v735 = vsub.f32 2.0, %v727
    %v736 = vsub.f32 2.0, %v728
    %v737 = vmul.f32 %v713, %v729
    %v738 = vmul.f32 %v714, %v730
    %v739 = vmul.f32 %v715, %v731
    %v740 = vmul.f32 %v716, %v732
    %v741 = vmul.f32 %v717, %v733
    %v742 = vmul.f32 %v718, %v734
    %v743 = vmul.f32 %v719, %v735
    %v744 = vmul.f32 %v720, %v736
    %v745 = vmul.f32 %v610, %v737
    %v746 = vmul.f32 %v612, %v737
    %v747 = vmul.f32 %v614, %v738
    %v748 = vmul.f32 %v616, %v738
    %v749 = vmul.f32 %v618, %v739
    %v750 = vmul.f32 %v620, %v739
    %v751 = vmul.f32 %v622, %v740
    %v752 = vmul.f32 %v624, %v740
    %v753 = vmul.f32 %v626, %v741
    %v754 = vmul.f32 %v628, %v741
    %v755 = vmul.f32 %v630, %v742
    %v756 = vmul.f32 %v632, %v742
    %v757 = vmul.f32 %v634, %v743
    %v758 = vmul.f32 %v636, %v743
    %v759 = vmul.f32 %v638, %v744
    %v760 = vmul.f32 %v640, %v744
    %762 = vset.pattern.permute.xlu0 0
    %763 = vperm.xlu0 %762, %v745
    %v764 = vpop.permute.xlu0 %763
    %767 = vset.pattern.permute.xlu0 0
    %768 = vperm.xlu0 %767, %v746
    %v769 = vpop.permute.xlu0 %768
    %772 = vset.pattern.permute.xlu0 0
    %773 = vperm.xlu0 %772, %v747
    %v774 = vpop.permute.xlu0 %773
    %777 = vset.pattern.permute.xlu0 0
    %778 = vperm.xlu0 %777, %v748
    %v779 = vpop.permute.xlu0 %778
    %782 = vset.pattern.permute.xlu0 0
    %783 = vperm.xlu0 %782, %v749
    %v784 = vpop.permute.xlu0 %783
    %787 = vset.pattern.permute.xlu0 0
    %788 = vperm.xlu0 %787, %v750
    %v789 = vpop.permute.xlu0 %788
    %792 = vset.pattern.permute.xlu0 0
    %793 = vperm.xlu0 %792, %v751
    %v794 = vpop.permute.xlu0 %793
    %797 = vset.pattern.permute.xlu0 0
    %798 = vperm.xlu0 %797, %v752
    %v799 = vpop.permute.xlu0 %798
    %802 = vset.pattern.permute.xlu0 0
    %803 = vperm.xlu0 %802, %v753
    %v804 = vpop.permute.xlu0 %803
    %807 = vset.pattern.permute.xlu0 0
    %808 = vperm.xlu0 %807, %v754
    %v809 = vpop.permute.xlu0 %808
    %812 = vset.pattern.permute.xlu0 0
    %813 = vperm.xlu0 %812, %v755
    %v814 = vpop.permute.xlu0 %813
    %817 = vset.pattern.permute.xlu0 0
    %818 = vperm.xlu0 %817, %v756
    %v819 = vpop.permute.xlu0 %818
    %822 = vset.pattern.permute.xlu0 0
    %823 = vperm.xlu0 %822, %v757
    %v824 = vpop.permute.xlu0 %823
    %827 = vset.pattern.permute.xlu0 0
    %828 = vperm.xlu0 %827, %v758
    %v829 = vpop.permute.xlu0 %828
    %832 = vset.pattern.permute.xlu0 0
    %833 = vperm.xlu0 %832, %v759
    %v834 = vpop.permute.xlu0 %833
    %837 = vset.pattern.permute.xlu0 0
    %838 = vperm.xlu0 %837, %v760
    %v839 = vpop.permute.xlu0 %838
    %v841 = vmul.f32 %v764, %v23
    %v842 = vmul.f32 %v764, %v24
    %v843 = vmul.f32 %v764, %v25
    %v844 = vmul.f32 %v764, %v26
    %v845 = vmul.f32 %v769, %v27
    %v846 = vmul.f32 %v769, %v28
    %v847 = vmul.f32 %v769, %v29
    %v848 = vmul.f32 %v769, %v30
    %v849 = vmul.f32 %v774, %v31
    %v850 = vmul.f32 %v774, %v32
    %v851 = vmul.f32 %v774, %v33
    %v852 = vmul.f32 %v774, %v34
    %v853 = vmul.f32 %v779, %v35
    %v854 = vmul.f32 %v779, %v36
    %v855 = vmul.f32 %v779, %v37
    %v856 = vmul.f32 %v779, %v38
    %v857 = vmul.f32 %v784, %v39
    %v858 = vmul.f32 %v784, %v40
    %v859 = vmul.f32 %v784, %v41
    %v860 = vmul.f32 %v784, %v42
    %v861 = vmul.f32 %v789, %v43
    %v862 = vmul.f32 %v789, %v44
    %v863 = vmul.f32 %v789, %v45
    %v864 = vmul.f32 %v789, %v46
    %v865 = vmul.f32 %v794, %v47
    %v866 = vmul.f32 %v794, %v48
    %v867 = vmul.f32 %v794, %v49
    %v868 = vmul.f32 %v794, %v50
    %v869 = vmul.f32 %v799, %v51
    %v870 = vmul.f32 %v799, %v52
    %v871 = vmul.f32 %v799, %v53
    %v872 = vmul.f32 %v799, %v54
    %v873 = vmul.f32 %v804, %v55
    %v874 = vmul.f32 %v804, %v56
    %v875 = vmul.f32 %v804, %v57
    %v876 = vmul.f32 %v804, %v58
    %v877 = vmul.f32 %v809, %v59
    %v878 = vmul.f32 %v809, %v60
    %v879 = vmul.f32 %v809, %v61
    %v880 = vmul.f32 %v809, %v62
    %v881 = vmul.f32 %v814, %v63
    %v882 = vmul.f32 %v814, %v64
    %v883 = vmul.f32 %v814, %v65
    %v884 = vmul.f32 %v814, %v66
    %v885 = vmul.f32 %v819, %v67
    %v886 = vmul.f32 %v819, %v68
    %v887 = vmul.f32 %v819, %v69
    %v888 = vmul.f32 %v819, %v70
    %v889 = vmul.f32 %v824, %v71
    %v890 = vmul.f32 %v824, %v72
    %v891 = vmul.f32 %v824, %v73
    %v892 = vmul.f32 %v824, %v74
    %v893 = vmul.f32 %v829, %v75
    %v894 = vmul.f32 %v829, %v76
    %v895 = vmul.f32 %v829, %v77
    %v896 = vmul.f32 %v829, %v78
    %v897 = vmul.f32 %v834, %v79
    %v898 = vmul.f32 %v834, %v80
    %v899 = vmul.f32 %v834, %v81
    %v900 = vmul.f32 %v834, %v82
    %v901 = vmul.f32 %v839, %v83
    %v902 = vmul.f32 %v839, %v84
    %v903 = vmul.f32 %v839, %v85
    %v904 = vmul.f32 %v839, %v86
    %v905 = vadd.f32 %v841, %v845
    %v906 = vrot.slane %v905, 4
    %v907 = vadd.f32 %v905, %v906
    %v908 = vrot.slane %v907, 2
    %v909 = vadd.f32 %v907, %v908
    %v910 = vrot.slane %v909, 1
    %v911 = vadd.f32 %v909, %v910
    %v912 = vadd.f32 %v842, %v846
    %v913 = vrot.slane %v912, 4
    %v914 = vadd.f32 %v912, %v913
    %v915 = vrot.slane %v914, 2
    %v916 = vadd.f32 %v914, %v915
    %v917 = vrot.slane %v916, 1
    %v918 = vadd.f32 %v916, %v917
    %v919 = vadd.f32 %v843, %v847
    %v920 = vrot.slane %v919, 4
    %v921 = vadd.f32 %v919, %v920
    %v922 = vrot.slane %v921, 2
    %v923 = vadd.f32 %v921, %v922
    %v924 = vrot.slane %v923, 1
    %v925 = vadd.f32 %v923, %v924
    %v926 = vadd.f32 %v844, %v848
    %v927 = vrot.slane %v926, 4
    %v928 = vadd.f32 %v926, %v927
    %v929 = vrot.slane %v928, 2
    %v930 = vadd.f32 %v928, %v929
    %v931 = vrot.slane %v930, 1
    %v932 = vadd.f32 %v930, %v931
    %v933 = vadd.f32 %v849, %v853
    %v934 = vrot.slane %v933, 4
    %v935 = vadd.f32 %v933, %v934
    %v936 = vrot.slane %v935, 2
    %v937 = vadd.f32 %v935, %v936
    %v938 = vrot.slane %v937, 1
    %v939 = vadd.f32 %v937, %v938
    %v940 = vadd.f32 %v850, %v854
    %v941 = vrot.slane %v940, 4
    %v942 = vadd.f32 %v940, %v941
    %v943 = vrot.slane %v942, 2
    %v944 = vadd.f32 %v942, %v943
    %v945 = vrot.slane %v944, 1
    %v946 = vadd.f32 %v944, %v945
    %v947 = vadd.f32 %v851, %v855
    %v948 = vrot.slane %v947, 4
    %v949 = vadd.f32 %v947, %v948
    %v950 = vrot.slane %v949, 2
    %v951 = vadd.f32 %v949, %v950
    %v952 = vrot.slane %v951, 1
    %v953 = vadd.f32 %v951, %v952
    %v954 = vadd.f32 %v852, %v856
    %v955 = vrot.slane %v954, 4
    %v956 = vadd.f32 %v954, %v955
    %v957 = vrot.slane %v956, 2
    %v958 = vadd.f32 %v956, %v957
    %v959 = vrot.slane %v958, 1
    %v960 = vadd.f32 %v958, %v959
    %v961 = vadd.f32 %v857, %v861
    %v962 = vrot.slane %v961, 4
    %v963 = vadd.f32 %v961, %v962
    %v964 = vrot.slane %v963, 2
    %v965 = vadd.f32 %v963, %v964
    %v966 = vrot.slane %v965, 1
    %v967 = vadd.f32 %v965, %v966
    %v968 = vadd.f32 %v858, %v862
    %v969 = vrot.slane %v968, 4
    %v970 = vadd.f32 %v968, %v969
    %v971 = vrot.slane %v970, 2
    %v972 = vadd.f32 %v970, %v971
    %v973 = vrot.slane %v972, 1
    %v974 = vadd.f32 %v972, %v973
    %v975 = vadd.f32 %v859, %v863
    %v976 = vrot.slane %v975, 4
    %v977 = vadd.f32 %v975, %v976
    %v978 = vrot.slane %v977, 2
    %v979 = vadd.f32 %v977, %v978
    %v980 = vrot.slane %v979, 1
    %v981 = vadd.f32 %v979, %v980
    %v982 = vadd.f32 %v860, %v864
    %v983 = vrot.slane %v982, 4
    %v984 = vadd.f32 %v982, %v983
    %v985 = vrot.slane %v984, 2
    %v986 = vadd.f32 %v984, %v985
    %v987 = vrot.slane %v986, 1
    %v988 = vadd.f32 %v986, %v987
    %v989 = vadd.f32 %v865, %v869
    %v990 = vrot.slane %v989, 4
    %v991 = vadd.f32 %v989, %v990
    %v992 = vrot.slane %v991, 2
    %v993 = vadd.f32 %v991, %v992
    %v994 = vrot.slane %v993, 1
    %v995 = vadd.f32 %v993, %v994
    %v996 = vadd.f32 %v866, %v870
    %v997 = vrot.slane %v996, 4
    %v998 = vadd.f32 %v996, %v997
    %v999 = vrot.slane %v998, 2
    %v1000 = vadd.f32 %v998, %v999
    %v1001 = vrot.slane %v1000, 1
    %v1002 = vadd.f32 %v1000, %v1001
    %v1003 = vadd.f32 %v867, %v871
    %v1004 = vrot.slane %v1003, 4
    %v1005 = vadd.f32 %v1003, %v1004
    %v1006 = vrot.slane %v1005, 2
    %v1007 = vadd.f32 %v1005, %v1006
    %v1008 = vrot.slane %v1007, 1
    %v1009 = vadd.f32 %v1007, %v1008
    %v1010 = vadd.f32 %v868, %v872
    %v1011 = vrot.slane %v1010, 4
    %v1012 = vadd.f32 %v1010, %v1011
    %v1013 = vrot.slane %v1012, 2
    %v1014 = vadd.f32 %v1012, %v1013
    %v1015 = vrot.slane %v1014, 1
    %v1016 = vadd.f32 %v1014, %v1015
    %v1017 = vadd.f32 %v873, %v877
    %v1018 = vrot.slane %v1017, 4
    %v1019 = vadd.f32 %v1017, %v1018
    %v1020 = vrot.slane %v1019, 2
    %v1021 = vadd.f32 %v1019, %v1020
    %v1022 = vrot.slane %v1021, 1
    %v1023 = vadd.f32 %v1021, %v1022
    %v1024 = vadd.f32 %v874, %v878
    %v1025 = vrot.slane %v1024, 4
    %v1026 = vadd.f32 %v1024, %v1025
    %v1027 = vrot.slane %v1026, 2
    %v1028 = vadd.f32 %v1026, %v1027
    %v1029 = vrot.slane %v1028, 1
    %v1030 = vadd.f32 %v1028, %v1029
    %v1031 = vadd.f32 %v875, %v879
    %v1032 = vrot.slane %v1031, 4
    %v1033 = vadd.f32 %v1031, %v1032
    %v1034 = vrot.slane %v1033, 2
    %v1035 = vadd.f32 %v1033, %v1034
    %v1036 = vrot.slane %v1035, 1
    %v1037 = vadd.f32 %v1035, %v1036
    %v1038 = vadd.f32 %v876, %v880
    %v1039 = vrot.slane %v1038, 4
    %v1040 = vadd.f32 %v1038, %v1039
    %v1041 = vrot.slane %v1040, 2
    %v1042 = vadd.f32 %v1040, %v1041
    %v1043 = vrot.slane %v1042, 1
    %v1044 = vadd.f32 %v1042, %v1043
    %v1045 = vadd.f32 %v881, %v885
    %v1046 = vrot.slane %v1045, 4
    %v1047 = vadd.f32 %v1045, %v1046
    %v1048 = vrot.slane %v1047, 2
    %v1049 = vadd.f32 %v1047, %v1048
    %v1050 = vrot.slane %v1049, 1
    %v1051 = vadd.f32 %v1049, %v1050
    %v1052 = vadd.f32 %v882, %v886
    %v1053 = vrot.slane %v1052, 4
    %v1054 = vadd.f32 %v1052, %v1053
    %v1055 = vrot.slane %v1054, 2
    %v1056 = vadd.f32 %v1054, %v1055
    %v1057 = vrot.slane %v1056, 1
    %v1058 = vadd.f32 %v1056, %v1057
    %v1059 = vadd.f32 %v883, %v887
    %v1060 = vrot.slane %v1059, 4
    %v1061 = vadd.f32 %v1059, %v1060
    %v1062 = vrot.slane %v1061, 2
    %v1063 = vadd.f32 %v1061, %v1062
    %v1064 = vrot.slane %v1063, 1
    %v1065 = vadd.f32 %v1063, %v1064
    %v1066 = vadd.f32 %v884, %v888
    %v1067 = vrot.slane %v1066, 4
    %v1068 = vadd.f32 %v1066, %v1067
    %v1069 = vrot.slane %v1068, 2
    %v1070 = vadd.f32 %v1068, %v1069
    %v1071 = vrot.slane %v1070, 1
    %v1072 = vadd.f32 %v1070, %v1071
    %v1073 = vadd.f32 %v889, %v893
    %v1074 = vrot.slane %v1073, 4
    %v1075 = vadd.f32 %v1073, %v1074
    %v1076 = vrot.slane %v1075, 2
    %v1077 = vadd.f32 %v1075, %v1076
    %v1078 = vrot.slane %v1077, 1
    %v1079 = vadd.f32 %v1077, %v1078
    %v1080 = vadd.f32 %v890, %v894
    %v1081 = vrot.slane %v1080, 4
    %v1082 = vadd.f32 %v1080, %v1081
    %v1083 = vrot.slane %v1082, 2
    %v1084 = vadd.f32 %v1082, %v1083
    %v1085 = vrot.slane %v1084, 1
    %v1086 = vadd.f32 %v1084, %v1085
    %v1087 = vadd.f32 %v891, %v895
    %v1088 = vrot.slane %v1087, 4
    %v1089 = vadd.f32 %v1087, %v1088
    %v1090 = vrot.slane %v1089, 2
    %v1091 = vadd.f32 %v1089, %v1090
    %v1092 = vrot.slane %v1091, 1
    %v1093 = vadd.f32 %v1091, %v1092
    %v1094 = vadd.f32 %v892, %v896
    %v1095 = vrot.slane %v1094, 4
    %v1096 = vadd.f32 %v1094, %v1095
    %v1097 = vrot.slane %v1096, 2
    %v1098 = vadd.f32 %v1096, %v1097
    %v1099 = vrot.slane %v1098, 1
    %v1100 = vadd.f32 %v1098, %v1099
    %v1101 = vadd.f32 %v897, %v901
    %v1102 = vrot.slane %v1101, 4
    %v1103 = vadd.f32 %v1101, %v1102
    %v1104 = vrot.slane %v1103, 2
    %v1105 = vadd.f32 %v1103, %v1104
    %v1106 = vrot.slane %v1105, 1
    %v1107 = vadd.f32 %v1105, %v1106
    %v1108 = vadd.f32 %v898, %v902
    %v1109 = vrot.slane %v1108, 4
    %v1110 = vadd.f32 %v1108, %v1109
    %v1111 = vrot.slane %v1110, 2
    %v1112 = vadd.f32 %v1110, %v1111
    %v1113 = vrot.slane %v1112, 1
    %v1114 = vadd.f32 %v1112, %v1113
    %v1115 = vadd.f32 %v899, %v903
    %v1116 = vrot.slane %v1115, 4
    %v1117 = vadd.f32 %v1115, %v1116
    %v1118 = vrot.slane %v1117, 2
    %v1119 = vadd.f32 %v1117, %v1118
    %v1120 = vrot.slane %v1119, 1
    %v1121 = vadd.f32 %v1119, %v1120
    %v1122 = vadd.f32 %v900, %v904
    %v1123 = vrot.slane %v1122, 4
    %v1124 = vadd.f32 %v1122, %v1123
    %v1125 = vrot.slane %v1124, 2
    %v1126 = vadd.f32 %v1124, %v1125
    %v1127 = vrot.slane %v1126, 1
    %v1128 = vadd.f32 %v1126, %v1127
    %vm1161 = vcmask 1041409
    %v1162 = vsel %vm1161, %v939, %v911
    %vm1163 = vcmask 1042434
    %v1164 = vsel %vm1163, %v967, %v1162
    %vm1165 = vcmask 1043459
    %v1166 = vsel %vm1165, %v995, %v1164
    %vm1167 = vcmask 1044484
    %v1168 = vsel %vm1167, %v1023, %v1166
    %vm1169 = vcmask 1045509
    %v1170 = vsel %vm1169, %v1051, %v1168
    %vm1171 = vcmask 1046534
    %v1172 = vsel %vm1171, %v1079, %v1170
    %vm1173 = vcmask 1047559
    %v1174 = vsel %vm1173, %v1107, %v1172
    %v1175 = vsel %vm1161, %v946, %v918
    %v1176 = vsel %vm1163, %v974, %v1175
    %v1177 = vsel %vm1165, %v1002, %v1176
    %v1178 = vsel %vm1167, %v1030, %v1177
    %v1179 = vsel %vm1169, %v1058, %v1178
    %v1180 = vsel %vm1171, %v1086, %v1179
    %v1181 = vsel %vm1173, %v1114, %v1180
    %v1182 = vsel %vm1161, %v953, %v925
    %v1183 = vsel %vm1163, %v981, %v1182
    %v1184 = vsel %vm1165, %v1009, %v1183
    %v1185 = vsel %vm1167, %v1037, %v1184
    %v1186 = vsel %vm1169, %v1065, %v1185
    %v1187 = vsel %vm1171, %v1093, %v1186
    %v1188 = vsel %vm1173, %v1121, %v1187
    %v1189 = vsel %vm1161, %v960, %v932
    %v1190 = vsel %vm1163, %v988, %v1189
    %v1191 = vsel %vm1165, %v1016, %v1190
    %v1192 = vsel %vm1167, %v1044, %v1191
    %v1193 = vsel %vm1169, %v1072, %v1192
    %v1194 = vsel %vm1171, %v1100, %v1193
    %v1195 = vsel %vm1173, %v1128, %v1194
    %1200 = vst [vmem:[#allocation3] sm:$0xff] %v1174
    %1201 = vst [vmem:[#allocation3 + $0x8] sm:$0xff] %v1181
    %1202 = vst [vmem:[#allocation3 + $0x10] sm:$0xff] %v1188
    %1203 = vst [vmem:[#allocation3 + $0x18] sm:$0xff] %v1195
    // Predicated region
    $region22: #{tpu_custom_call.1} parent=1 // pred_check
      _
    $region23: #{tpu_custom_call.1} parent=1 // pred_check_branch
      %1205 = sbr.rel (0) target = $region25
    $region24: #{tpu_custom_call.1} parent=1 // pred_region
      %1207 = vsyncadd [#allocation4], 0
      %s1209 = sshll.u32 [#allocation3], 4
      %s1210 = int_to_ptr.vmem [resolvable:$true] %s1209
      %s1211 = sshll.u32 %s5, 4
      %s1212 = int_to_ptr.hbm [resolvable:$true] %s1211
      %1214 = dma.vmem_to_hbm [thread:$0]  %s1210, 512, %s1212, [#allocation4]
    $region25: #{tpu_custom_call.1} parent=1 // pred_fallthru
      _
    // Predicated region
    $region26: #{tpu_custom_call.1} parent=1 // pred_check
      _
    $region27: #{tpu_custom_call.1} parent=1 // pred_check_branch
      %1216 = sbr.rel (0) target = $region29
    $region28: #{tpu_custom_call.1} parent=1 // pred_region
      %1218 = dma.done [#allocation4], 512
    $region29: #{tpu_custom_call.1} parent=1 // pred_fallthru
      _
    %1219 = vsyncpa [#allocation4], 1

</llo_original>
